<compile_context>
chip_gen: v7x
topology: tpu7x:2x2x1
jax: 0.10.0
libtpu: 0.0.40
codegen_flags: <defaults>
</compile_context>

<pallas_src>
import functools
import numpy as np
import jax
import jax.numpy as jnp
from jax.experimental import pallas as pl
from jax.experimental.pallas import tpu as pltpu

LN_EPS = 1e-5


# ----------------------------------------------------------------------------
# Fused kernel: expand linear + per-chunk LayerNorm
#   x_ref    : (tm, C)      input token tile
#   w_ref    : (C, 2C)      expand weight (bf16)
#   seg_ref  : (2C, 4)      block-diagonal 0/1 chunk-membership matrix
#   segT_ref : (4, 2C)      its transpose (broadcast-back)
#   g_ref    : (1, 2C)      gamma tiled 4x  (gamma[j % (C/2)])
#   b_ref    : (1, 2C)      beta  tiled 4x
#   o_ref    : (tm, 2C)     LayerNorm-ed expanded tokens (pre-rearrange)
# ----------------------------------------------------------------------------
def _patch_expand_kernel(x_ref, w_ref, seg_ref, segT_ref, g_ref, b_ref, o_ref,
                         *, inv_chunk):
    # Expand: bf16 MXU matmul with f32 accumulation.
    y = jnp.dot(x_ref[...].astype(jnp.bfloat16), w_ref[...],
                preferred_element_type=jnp.float32)              # (tm, 2C) f32

    # Chunk-wise LayerNorm over the 4 contiguous (p1,p2) chunks of size C/2.
    # Segment matmuls compute per-chunk mean/var and broadcast them back,
    # keeping everything at the full 2C lane width.
    seg = seg_ref[...]                                           # (2C, 4)
    segT = segT_ref[...]                                         # (4, 2C)
    mu = jnp.dot(y, seg, preferred_element_type=jnp.float32) * inv_chunk
    mu_b = jnp.dot(mu, segT, preferred_element_type=jnp.float32)
    cen = y - mu_b
    var = jnp.dot(cen * cen, seg,
                  preferred_element_type=jnp.float32) * inv_chunk
    var_b = jnp.dot(var, segT, preferred_element_type=jnp.float32)
    yn = cen * jax.lax.rsqrt(var_b + LN_EPS)
    o_ref[...] = (yn * g_ref[0] + b_ref[0]).astype(o_ref.dtype)


# ----------------------------------------------------------------------------
# Wrapper: tiling, BlockSpecs, and the (pure data movement) rearrange
# ----------------------------------------------------------------------------
def patch_expand_pallas(x, w_expand, gamma, beta, H, W, *, max_tile=512):
    B, L, C = x.shape
    assert L == H * W, "input feature has wrong size"
    assert C % 2 == 0
    c_half = C // 2
    C2 = 2 * C
    T = B * L

    # Largest token tile that divides T, is a multiple of 8 and <= max_tile.
    tm = T
    for t in range(8, min(T, max_tile) + 1, 8):
        if T % t == 0:
            tm = t

    x2 = x.reshape(T, C)
    w_bf = w_expand.astype(jnp.bfloat16)

    # Chunk-membership matrix (built on host, tiny constant).
    seg_np = (np.arange(C2)[:, None] // c_half ==
              np.arange(4)[None, :]).astype(np.float32)          # (2C, 4)
    seg = jnp.asarray(seg_np)
    segT = jnp.asarray(seg_np.T)                                 # (4, 2C)

    g_t = jnp.tile(gamma.reshape(1, c_half), (1, 4))             # (1, 2C)
    b_t = jnp.tile(beta.reshape(1, c_half), (1, 4))              # (1, 2C)

    kernel = functools.partial(_patch_expand_kernel, inv_chunk=1.0 / c_half)

    y = pl.pallas_call(
        kernel,
        out_shape=jax.ShapeDtypeStruct((T, C2), x.dtype),
        grid=(T // tm,),
        in_specs=[
            pl.BlockSpec((tm, C), lambda i: (i, 0)),             # x tile
            pl.BlockSpec((C, C2), lambda i: (0, 0)),             # W_expand
            pl.BlockSpec((C2, 4), lambda i: (0, 0)),             # seg
            pl.BlockSpec((4, C2), lambda i: (0, 0)),             # seg.T
            pl.BlockSpec((1, C2), lambda i: (0, 0)),             # gamma (tiled)
            pl.BlockSpec((1, C2), lambda i: (0, 0)),             # beta  (tiled)
        ],
        out_specs=pl.BlockSpec((tm, C2), lambda i: (i, 0)),
        compiler_params=pltpu.CompilerParams(
            dimension_semantics=("parallel",)),
    )(x2, w_bf, seg, segT, g_t, b_t)

    # rearrange 'b h w (p1 p2 c) -> b (h p1) (w p2) c'  (pure permutation)
    y = y.reshape(B, H, W, 2, 2, c_half)
    y = y.transpose(0, 1, 3, 2, 4, 5)
    return y.reshape(B, 4 * L, c_half)


# ----------------------------------------------------------------------------
# Pure-JAX reference (mirrors the PyTorch math)
# ----------------------------------------------------------------------------
def patch_expand_ref(x, w_expand, gamma, beta, H, W):
    B, L, C = x.shape
    c_half = C // 2
    y = jnp.einsum("blc,cd->bld", x, w_expand)                   # (B, L, 2C)
    y = y.reshape(B, H, W, 2, 2, c_half).transpose(0, 1, 3, 2, 4, 5)
    y = y.reshape(B, 4 * L, c_half)
    mu = y.mean(-1, keepdims=True)
    var = ((y - mu) ** 2).mean(-1, keepdims=True)
    return (y - mu) / jnp.sqrt(var + LN_EPS) * gamma + beta


if __name__ == "__main__":
    # PatchExpand config: input_resolution=(8,8), dim=32, dim_scale=2.
    B, H, W, dim = 2, 8, 8, 32
    L = H * W
    c_half = dim // 2

    key = jax.random.PRNGKey(0)
    kx, kw, kg, kb = jax.random.split(key, 4)
    x = jax.random.normal(kx, (B, L, dim), jnp.float32)
    # nn.Linear(dim, 2*dim, bias=False) stored right-multiply: (dim, 2*dim)
    w_expand = 0.02 * jax.random.normal(kw, (dim, 2 * dim), jnp.float32)
    gamma = 1.0 + 0.1 * jax.random.normal(kg, (c_half,), jnp.float32)
    beta = 0.1 * jax.random.normal(kb, (c_half,), jnp.float32)

    out = patch_expand_pallas(x, w_expand, gamma, beta, H, W)
    out = jax.block_until_ready(out)

    ref = jax.block_until_ready(patch_expand_ref(x, w_expand, gamma, beta, H, W))

    assert out.shape == (B, 4 * L, c_half)
    assert bool(jnp.all(jnp.isfinite(out)))
    np.testing.assert_allclose(np.asarray(out), np.asarray(ref),
                               rtol=2e-2, atol=2e-2)
    print("KERNEL_OK")
</pallas_src>

<mosaic_0001>
module attributes {stable_mosaic.version = 11 : i64} {
  func.func @_patch_expand_kernel(%arg0: i32, %arg1: memref<128x32xf32, #tpu.memory_space<vmem>>, %arg2: memref<32x64xbf16, #tpu.memory_space<vmem>>, %arg3: memref<64x4xf32, #tpu.memory_space<vmem>>, %arg4: memref<4x64xf32, #tpu.memory_space<vmem>>, %arg5: memref<1x64xf32, #tpu.memory_space<vmem>>, %arg6: memref<1x64xf32, #tpu.memory_space<vmem>>, %arg7: memref<128x64xf32, #tpu.memory_space<vmem>>) attributes {dimension_semantics = [#tpu.dimension_semantics<parallel>], iteration_bounds = array<i64: 1>, scalar_prefetch = 0 : i64, scratch_operands = 0 : i64, tpu.core_type = #tpu.core_type<tc>, window_params = [{transform_indices = @transform_0, window_bounds = array<i64: 128, 32>}, {pipeline_mode = #tpu.pipeline_mode<synchronous>, transform_indices = @transform_1, window_bounds = array<i64: 32, 64>}, {pipeline_mode = #tpu.pipeline_mode<synchronous>, transform_indices = @transform_2, window_bounds = array<i64: 64, 4>}, {pipeline_mode = #tpu.pipeline_mode<synchronous>, transform_indices = @transform_3, window_bounds = array<i64: 4, 64>}, {pipeline_mode = #tpu.pipeline_mode<synchronous>, transform_indices = @transform_4, window_bounds = array<i64: 1, 64>}, {pipeline_mode = #tpu.pipeline_mode<synchronous>, transform_indices = @transform_5, window_bounds = array<i64: 1, 64>}, {transform_indices = @transform_6, window_bounds = array<i64: 128, 64>}]} {
    %c0 = arith.constant 0 : index
    %c0_0 = arith.constant 0 : index
    %0 = vector.load %arg1[%c0, %c0_0] : memref<128x32xf32, #tpu.memory_space<vmem>>, vector<128x32xf32>
    %1 = arith.truncf %0 : vector<128x32xf32> to vector<128x32xbf16>
    %c0_1 = arith.constant 0 : index
    %c0_2 = arith.constant 0 : index
    %2 = vector.load %arg2[%c0_1, %c0_2] : memref<32x64xbf16, #tpu.memory_space<vmem>>, vector<32x64xbf16>
    %cst = arith.constant dense<0.000000e+00> : vector<128x64xf32>
    %3 = tpu.matmul %1, %2, %cst {dimension_numbers = #tpu.dot_dimension_numbers<[1], [0], [0], [1], [0, 0, 1, 1], [], []>} : vector<128x32xbf16>, vector<32x64xbf16>, vector<128x64xf32> -> vector<128x64xf32>
    %c0_3 = arith.constant 0 : index
    %c0_4 = arith.constant 0 : index
    %4 = vector.load %arg3[%c0_3, %c0_4] : memref<64x4xf32, #tpu.memory_space<vmem>>, vector<64x4xf32>
    %c0_5 = arith.constant 0 : index
    %c0_6 = arith.constant 0 : index
    %5 = vector.load %arg4[%c0_5, %c0_6] : memref<4x64xf32, #tpu.memory_space<vmem>>, vector<4x64xf32>
    %cst_7 = arith.constant dense<0.000000e+00> : vector<128x4xf32>
    %6 = tpu.matmul %3, %4, %cst_7 {dimension_numbers = #tpu.dot_dimension_numbers<[1], [0], [0], [1], [0, 0, 1, 1], [], []>} : vector<128x64xf32>, vector<64x4xf32>, vector<128x4xf32> -> vector<128x4xf32>
    %cst_8 = arith.constant 6.250000e-02 : f32
    %7 = vector.broadcast %cst_8 : f32 to vector<128x4xf32>
    %8 = arith.mulf %6, %7 : vector<128x4xf32>
    %cst_9 = arith.constant dense<0.000000e+00> : vector<128x64xf32>
    %9 = tpu.matmul %8, %5, %cst_9 {dimension_numbers = #tpu.dot_dimension_numbers<[1], [0], [0], [1], [0, 0, 1, 1], [], []>} : vector<128x4xf32>, vector<4x64xf32>, vector<128x64xf32> -> vector<128x64xf32>
    %10 = arith.subf %3, %9 : vector<128x64xf32>
    %11 = arith.mulf %10, %10 : vector<128x64xf32>
    %cst_10 = arith.constant dense<0.000000e+00> : vector<128x4xf32>
    %12 = tpu.matmul %11, %4, %cst_10 {dimension_numbers = #tpu.dot_dimension_numbers<[1], [0], [0], [1], [0, 0, 1, 1], [], []>} : vector<128x64xf32>, vector<64x4xf32>, vector<128x4xf32> -> vector<128x4xf32>
    %cst_11 = arith.constant 6.250000e-02 : f32
    %13 = vector.broadcast %cst_11 : f32 to vector<128x4xf32>
    %14 = arith.mulf %12, %13 : vector<128x4xf32>
    %cst_12 = arith.constant dense<0.000000e+00> : vector<128x64xf32>
    %15 = tpu.matmul %14, %5, %cst_12 {dimension_numbers = #tpu.dot_dimension_numbers<[1], [0], [0], [1], [0, 0, 1, 1], [], []>} : vector<128x4xf32>, vector<4x64xf32>, vector<128x64xf32> -> vector<128x64xf32>
    %cst_13 = arith.constant 9.99999974E-6 : f32
    %16 = vector.broadcast %cst_13 : f32 to vector<128x64xf32>
    %17 = arith.addf %15, %16 : vector<128x64xf32>
    %18 = math.rsqrt %17 : vector<128x64xf32>
    %19 = arith.mulf %10, %18 : vector<128x64xf32>
    %c0_14 = arith.constant 0 : index
    %c0_15 = arith.constant 0 : index
    %20 = vector.load %arg5[%c0_14, %c0_15] : memref<1x64xf32, #tpu.memory_space<vmem>>, vector<1x64xf32>
    %21 = vector.shape_cast %20 : vector<1x64xf32> to vector<64xf32>
    %22 = vector.shape_cast %21 : vector<64xf32> to vector<1x64xf32>
    %23 = vector.broadcast %22 : vector<1x64xf32> to vector<128x64xf32>
    %24 = arith.mulf %19, %23 : vector<128x64xf32>
    %c0_16 = arith.constant 0 : index
    %c0_17 = arith.constant 0 : index
    %25 = vector.load %arg6[%c0_16, %c0_17] : memref<1x64xf32, #tpu.memory_space<vmem>>, vector<1x64xf32>
    %26 = vector.shape_cast %25 : vector<1x64xf32> to vector<64xf32>
    %27 = vector.shape_cast %26 : vector<64xf32> to vector<1x64xf32>
    %28 = vector.broadcast %27 : vector<1x64xf32> to vector<128x64xf32>
    %29 = arith.addf %24, %28 : vector<128x64xf32>
    %c0_18 = arith.constant 0 : index
    %c0_19 = arith.constant 0 : index
    %30 = vector.load %arg7[%c0_18, %c0_19] : memref<128x64xf32, #tpu.memory_space<vmem>>, vector<128x64xf32>
    tpu.vector_store %arg7[%c0_18, %c0_19], %29 {strides = array<i32>} : memref<128x64xf32, #tpu.memory_space<vmem>>, vector<128x64xf32>,
    return
  }
  func.func @transform_0(%arg0: i32) -> (i32, i32) {
    %c0_i32 = arith.constant 0 : i32
    %c0_i32_0 = arith.constant 0 : i32
    return %arg0, %c0_i32 : i32, i32
  }
  func.func @transform_1(%arg0: i32) -> (i32, i32) {
    %c0_i32 = arith.constant 0 : i32
    %c0_i32_0 = arith.constant 0 : i32
    %c0_i32_1 = arith.constant 0 : i32
    return %c0_i32, %c0_i32_0 : i32, i32
  }
  func.func @transform_2(%arg0: i32) -> (i32, i32) {
    %c0_i32 = arith.constant 0 : i32
    %c0_i32_0 = arith.constant 0 : i32
    %c0_i32_1 = arith.constant 0 : i32
    return %c0_i32, %c0_i32_0 : i32, i32
  }
  func.func @transform_3(%arg0: i32) -> (i32, i32) {
    %c0_i32 = arith.constant 0 : i32
    %c0_i32_0 = arith.constant 0 : i32
    %c0_i32_1 = arith.constant 0 : i32
    return %c0_i32, %c0_i32_0 : i32, i32
  }
  func.func @transform_4(%arg0: i32) -> (i32, i32) {
    %c0_i32 = arith.constant 0 : i32
    %c0_i32_0 = arith.constant 0 : i32
    %c0_i32_1 = arith.constant 0 : i32
    return %c0_i32, %c0_i32_0 : i32, i32
  }
  func.func @transform_5(%arg0: i32) -> (i32, i32) {
    %c0_i32 = arith.constant 0 : i32
    %c0_i32_0 = arith.constant 0 : i32
    %c0_i32_1 = arith.constant 0 : i32
    return %c0_i32, %c0_i32_0 : i32, i32
  }
  func.func @transform_6(%arg0: i32) -> (i32, i32) {
    %c0_i32 = arith.constant 0 : i32
    %c0_i32_0 = arith.constant 0 : i32
    return %arg0, %c0_i32 : i32, i32
  }
}

</mosaic_0001>

<llo_original>
// kernel: tpu_custom_call.1
$region0: #{tpu_custom_call.1}
  #allocation0 [shape = 'u32[]', space=smem, size = 0x4, offset = 0x4, fixed_abs, tag = 'smem constant byte address 0x4 - core index']
  #allocation1 [shape = 'u32[144,128]{1,0:T(1,128)}', space=vmem, size = 0x12000, scoped, tag = 'internal scratch']
  %s0 = inlined_call_operand.vmem [shape: f32[128,32], index: 0, kind: input, shape index: {}]
  %s1 = inlined_call_operand.vmem [shape: bf16[32,64], index: 1, kind: input, shape index: {}]
  %s2 = inlined_call_operand.vmem [shape: f32[64,4], index: 2, kind: input, shape index: {}]
  %s3 = inlined_call_operand.vmem [shape: f32[4,64], index: 3, kind: input, shape index: {}]
  %s4 = inlined_call_operand.vmem [shape: f32[1,64], index: 4, kind: input, shape index: {}]
  %s5 = inlined_call_operand.vmem [shape: f32[1,64], index: 5, kind: input, shape index: {}]
  %s6 = inlined_call_operand.vmem [shape: f32[128,64], index: 6, kind: output, shape index: {}]
  %s7 = sld [smem:[#allocation0]]
  $region34: #{tpu_custom_call.1} parent=0
    _
  %s9 = ssub.s32 1, %s7
  %s10 = scalar_select 0, %s9, %s7
  // Predicated region
  $region2: #{tpu_custom_call.1} parent=0 // pred_check
    _
  $region3: #{tpu_custom_call.1} parent=0 // pred_check_branch
    %12 = sbr.rel (0) target = $region5
  $region4: #{tpu_custom_call.1} parent=0 // pred_region
    _
  $region5: #{tpu_custom_call.1} parent=0 // pred_fallthru
    _
  // Predicated region
  $region6: #{tpu_custom_call.1} parent=0 // pred_check
    _
  $region7: #{tpu_custom_call.1} parent=0 // pred_check_branch
    %14 = sbr.rel (0) target = $region9
  $region8: #{tpu_custom_call.1} parent=0 // pred_region
    _
  $region9: #{tpu_custom_call.1} parent=0 // pred_fallthru
    _
  // Predicated region
  $region10: #{tpu_custom_call.1} parent=0 // pred_check
    _
  $region11: #{tpu_custom_call.1} parent=0 // pred_check_branch
    %16 = sbr.rel (0) target = $region13
  $region12: #{tpu_custom_call.1} parent=0 // pred_region
    _
  $region13: #{tpu_custom_call.1} parent=0 // pred_fallthru
    _
  // Predicated region
  $region14: #{tpu_custom_call.1} parent=0 // pred_check
    _
  $region15: #{tpu_custom_call.1} parent=0 // pred_check_branch
    %18 = sbr.rel (0) target = $region17
  $region16: #{tpu_custom_call.1} parent=0 // pred_region
    _
  $region17: #{tpu_custom_call.1} parent=0 // pred_fallthru
    _
  // Predicated region
  $region18: #{tpu_custom_call.1} parent=0 // pred_check
    _
  $region19: #{tpu_custom_call.1} parent=0 // pred_check_branch
    %20 = sbr.rel (0) target = $region21
  $region20: #{tpu_custom_call.1} parent=0 // pred_region
    _
  $region21: #{tpu_custom_call.1} parent=0 // pred_fallthru
    _
  // Predicated region
  $region22: #{tpu_custom_call.1} parent=0 // pred_check
    _
  $region23: #{tpu_custom_call.1} parent=0 // pred_check_branch
    %22 = sbr.rel (0) target = $region25
  $region24: #{tpu_custom_call.1} parent=0 // pred_region
    _
  $region25: #{tpu_custom_call.1} parent=0 // pred_fallthru
    _
  %v24 = vld [vmem:[%s0] sm:$0xff]
  %v25 = vld [vmem:[%s0 + $0x8] sm:$0xff]
  %v26 = vld [vmem:[%s0 + $0x10] sm:$0xff]
  %v27 = vld [vmem:[%s0 + $0x18] sm:$0xff]
  %v28 = vld [vmem:[%s0 + $0x20] sm:$0xff]
  %v29 = vld [vmem:[%s0 + $0x28] sm:$0xff]
  %v30 = vld [vmem:[%s0 + $0x30] sm:$0xff]
  %v31 = vld [vmem:[%s0 + $0x38] sm:$0xff]
  %v32 = vld [vmem:[%s0 + $0x40] sm:$0xff]
  %v33 = vld [vmem:[%s0 + $0x48] sm:$0xff]
  %v34 = vld [vmem:[%s0 + $0x50] sm:$0xff]
  %v35 = vld [vmem:[%s0 + $0x58] sm:$0xff]
  %v36 = vld [vmem:[%s0 + $0x60] sm:$0xff]
  %v37 = vld [vmem:[%s0 + $0x68] sm:$0xff]
  %v38 = vld [vmem:[%s0 + $0x70] sm:$0xff]
  %v39 = vld [vmem:[%s0 + $0x78] sm:$0xff]
  %v40 = vpack.c.bf16 %v25, %v24
  %v41 = vpack.c.bf16 %v27, %v26
  %v42 = vpack.c.bf16 %v29, %v28
  %v43 = vpack.c.bf16 %v31, %v30
  %v44 = vpack.c.bf16 %v33, %v32
  %v45 = vpack.c.bf16 %v35, %v34
  %v46 = vpack.c.bf16 %v37, %v36
  %v47 = vpack.c.bf16 %v39, %v38
  %v48 = vld [vmem:[%s1] sm:$0xf]
  %v49 = vld [vmem:[%s1 + $0x4] sm:$0xf]
  %v50 = vld [vmem:[%s1 + $0x8] sm:$0xf]
  %v51 = vld [vmem:[%s1 + $0xc] sm:$0xf]
  %v56 = vunpack.c.l.b16 %v48
  %v57 = vunpack.c.l.b16 %v49
  %v58 = vunpack.c.l.b16 %v50
  %v59 = vunpack.c.l.b16 %v51
  %v60 = vpack.c.b16 %v57, %v56
  %v61 = vpack.c.b16 %v59, %v58
  %vm64 = vcmask 261120
  %v66 = vsel %vm64, %v40, 0
  %v69 = vsel %vm64, %v41, 0
  %v72 = vsel %vm64, %v42, 0
  %v75 = vsel %vm64, %v43, 0
  %v78 = vsel %vm64, %v44, 0
  %v81 = vsel %vm64, %v45, 0
  %v84 = vsel %vm64, %v46, 0
  %v87 = vsel %vm64, %v47, 0
  %89 = vmatprep.subr.bf16.mxu0 0
  %90 = vmatpush1.bf16.msra.mxu0 %v60
  %91 = vmatprep.subr.bf16.mxu0 0
  %92 = vmatpush1.bf16.msra.mxu0 %v61
  %93 = vmatprep.subr.bf16.mxu0 0
  %94 = vmatpush1.bf16.msra.mxu0 0
  %95 = vmatprep.subr.bf16.mxu0 0
  %96 = vmatpush1.bf16.msra.mxu0 0
  %97 = vmatprep.subr.bf16.mxu0 0
  %98 = vmatpush1.bf16.msra.mxu0 0
  %99 = vmatprep.subr.bf16.mxu0 0
  %100 = vmatpush1.bf16.msra.mxu0 0
  %101 = vmatprep.subr.bf16.mxu0 0
  %102 = vmatpush1.bf16.msra.mxu0 0
  %103 = vmatprep.subr.bf16.mxu0 0
  %104 = vmatpush1.bf16.msra.mxu0 0
  %105 = vmatprep.subr.bf16.mxu0 0
  %106 = vmatpush1.bf16.msra.mxu0 0
  %107 = vmatprep.subr.bf16.mxu0 0
  %108 = vmatpush1.bf16.msra.mxu0 0
  %109 = vmatprep.subr.bf16.mxu0 0
  %110 = vmatpush1.bf16.msra.mxu0 0
  %111 = vmatprep.subr.bf16.mxu0 0
  %112 = vmatpush1.bf16.msra.mxu0 0
  %113 = vmatprep.subr.bf16.mxu0 0
  %114 = vmatpush1.bf16.msra.mxu0 0
  %115 = vmatprep.subr.bf16.mxu0 0
  %116 = vmatpush1.bf16.msra.mxu0 0
  %117 = vmatprep.subr.bf16.mxu0 0
  %118 = vmatpush1.bf16.msra.mxu0 0
  %119 = vmatprep.subr.bf16.mxu0 0
  %120 = vmatpush1.bf16.msra.mxu0 0
  %121 = vmatprep.mubr.bf16.mxu0 0
  %122 = vmatmul.mubr.bf16.gmra.mrb[0].mxu0 %v66
  %v123 = vpop.f32.mrb[0].mxu0
  %v124 = vadd.f32 0.0, %v123
  %v125 = vpop.f32.mrb[0].mxu0
  %v126 = vpop.f32.mrb[0].mxu0
  %v127 = vadd.f32 0.0, %v126
  %v128 = vpop.f32.mrb[0].mxu0
  %129 = vmatprep.mubr.bf16.mxu0 0
  %130 = vmatmul.mubr.bf16.gmra.mrb[0].mxu0 %v69
  %v131 = vpop.f32.mrb[0].mxu0
  %v132 = vadd.f32 0.0, %v131
  %v133 = vpop.f32.mrb[0].mxu0
  %v134 = vpop.f32.mrb[0].mxu0
  %v135 = vadd.f32 0.0, %v134
  %v136 = vpop.f32.mrb[0].mxu0
  %137 = vmatprep.mubr.bf16.mxu0 0
  %138 = vmatmul.mubr.bf16.gmra.mrb[0].mxu0 %v72
  %v139 = vpop.f32.mrb[0].mxu0
  %v140 = vadd.f32 0.0, %v139
  %v141 = vpop.f32.mrb[0].mxu0
  %v142 = vpop.f32.mrb[0].mxu0
  %v143 = vadd.f32 0.0, %v142
  %v144 = vpop.f32.mrb[0].mxu0
  %145 = vmatprep.mubr.bf16.mxu0 0
  %146 = vmatmul.mubr.bf16.gmra.mrb[0].mxu0 %v75
  %v147 = vpop.f32.mrb[0].mxu0
  %v148 = vadd.f32 0.0, %v147
  %v149 = vpop.f32.mrb[0].mxu0
  %v150 = vpop.f32.mrb[0].mxu0
  %v151 = vadd.f32 0.0, %v150
  %v152 = vpop.f32.mrb[0].mxu0
  %153 = vmatprep.mubr.bf16.mxu0 0
  %154 = vmatmul.mubr.bf16.gmra.mrb[0].mxu0 %v78
  %v155 = vpop.f32.mrb[0].mxu0
  %v156 = vadd.f32 0.0, %v155
  %v157 = vpop.f32.mrb[0].mxu0
  %v158 = vpop.f32.mrb[0].mxu0
  %v159 = vadd.f32 0.0, %v158
  %v160 = vpop.f32.mrb[0].mxu0
  %161 = vmatprep.mubr.bf16.mxu0 0
  %162 = vmatmul.mubr.bf16.gmra.mrb[0].mxu0 %v81
  %v163 = vpop.f32.mrb[0].mxu0
  %v164 = vadd.f32 0.0, %v163
  %v165 = vpop.f32.mrb[0].mxu0
  %v166 = vpop.f32.mrb[0].mxu0
  %v167 = vadd.f32 0.0, %v166
  %v168 = vpop.f32.mrb[0].mxu0
  %169 = vmatprep.mubr.bf16.mxu0 0
  %170 = vmatmul.mubr.bf16.gmra.mrb[0].mxu0 %v84
  %v171 = vpop.f32.mrb[0].mxu0
  %v172 = vadd.f32 0.0, %v171
  %v173 = vpop.f32.mrb[0].mxu0
  %v174 = vpop.f32.mrb[0].mxu0
  %v175 = vadd.f32 0.0, %v174
  %v176 = vpop.f32.mrb[0].mxu0
  %177 = vmatprep.mubr.bf16.mxu0 0
  %178 = vmatmul.mubr.bf16.gmra.mrb[0].mxu0 %v87
  %v179 = vpop.f32.mrb[0].mxu0
  %v180 = vadd.f32 0.0, %v179
  %v181 = vpop.f32.mrb[0].mxu0
  %v182 = vpop.f32.mrb[0].mxu0
  %v183 = vadd.f32 0.0, %v182
  %v184 = vpop.f32.mrb[0].mxu0
  %185 = vdwg.mxu0
  %v186 = vld [vmem:[%s2] sm:$0xff]
  %v187 = vld [vmem:[%s2 + $0x8] sm:$0xff]
  %v188 = vld [vmem:[%s2 + $0x10] sm:$0xff]
  %v189 = vld [vmem:[%s2 + $0x18] sm:$0xff]
  %v190 = vld [vmem:[%s2 + $0x20] sm:$0xff]
  %v191 = vld [vmem:[%s2 + $0x28] sm:$0xff]
  %v192 = vld [vmem:[%s2 + $0x30] sm:$0xff]
  %v193 = vld [vmem:[%s2 + $0x38] sm:$0xff]
  %v194 = vld [vmem:[%s3] sm:$0xf]
  %vm195 = vcmask 523264
  %v197 = vsel %vm195, %v124, 0
  %v200 = vsel %vm195, %v127, 0
  %v203 = vsel %vm195, %v132, 0
  %v206 = vsel %vm195, %v135, 0
  %v209 = vsel %vm195, %v140, 0
  %v212 = vsel %vm195, %v143, 0
  %v215 = vsel %vm195, %v148, 0
  %v218 = vsel %vm195, %v151, 0
  %v221 = vsel %vm195, %v156, 0
  %v224 = vsel %vm195, %v159, 0
  %v227 = vsel %vm195, %v164, 0
  %v230 = vsel %vm195, %v167, 0
  %v233 = vsel %vm195, %v172, 0
  %v236 = vsel %vm195, %v175, 0
  %v239 = vsel %vm195, %v180, 0
  %v242 = vsel %vm195, %v183, 0
  %244 = vmatprep.subr.mxu0 0.0
  %245 = vmatpush1.msra.mxu0 %v186
  %246 = vmatprep.subr.mxu0 0.0
  %247 = vmatpush1.msra.mxu0 %v187
  %248 = vmatprep.subr.mxu0 0.0
  %249 = vmatpush1.msra.mxu0 %v188
  %250 = vmatprep.subr.mxu0 0.0
  %251 = vmatpush1.msra.mxu0 %v189
  %252 = vmatprep.subr.mxu0 0.0
  %253 = vmatpush1.msra.mxu0 %v190
  %254 = vmatprep.subr.mxu0 0.0
  %255 = vmatpush1.msra.mxu0 %v191
  %256 = vmatprep.subr.mxu0 0.0
  %257 = vmatpush1.msra.mxu0 %v192
  %258 = vmatprep.subr.mxu0 0.0
  %259 = vmatpush1.msra.mxu0 %v193
  %260 = vmatprep.subr.mxu0 0.0
  %261 = vmatpush1.msra.mxu0 0.0
  %262 = vmatprep.subr.mxu0 0.0
  %263 = vmatpush1.msra.mxu0 0.0
  %264 = vmatprep.subr.mxu0 0.0
  %265 = vmatpush1.msra.mxu0 0.0
  %266 = vmatprep.subr.mxu0 0.0
  %267 = vmatpush1.msra.mxu0 0.0
  %268 = vmatprep.subr.mxu0 0.0
  %269 = vmatpush1.msra.mxu0 0.0
  %270 = vmatprep.subr.mxu0 0.0
  %271 = vmatpush1.msra.mxu0 0.0
  %272 = vmatprep.subr.mxu0 0.0
  %273 = vmatpush1.msra.mxu0 0.0
  %274 = vmatprep.subr.mxu0 0.0
  %275 = vmatpush1.msra.mxu0 0.0
  %276 = vmatprep.subr.mxu0 0.0
  %277 = vmatpush1.msra.mxu0 0.0
  %278 = vmatprep.subr.mxu0 0.0
  %279 = vmatpush1.msra.mxu0 0.0
  %280 = vmatprep.subr.mxu0 0.0
  %281 = vmatpush1.msra.mxu0 0.0
  %282 = vmatprep.subr.mxu0 0.0
  %283 = vmatpush1.msra.mxu0 0.0
  %284 = vmatprep.subr.mxu0 0.0
  %285 = vmatpush1.msra.mxu0 0.0
  %286 = vmatprep.subr.mxu0 0.0
  %287 = vmatpush1.msra.mxu0 0.0
  %288 = vmatprep.subr.mxu0 0.0
  %289 = vmatpush1.msra.mxu0 0.0
  %290 = vmatprep.subr.mxu0 0.0
  %291 = vmatpush1.msra.mxu0 0.0
  %292 = vmatprep.subr.mxu0 0.0
  %293 = vmatpush1.msra.mxu0 0.0
  %294 = vmatprep.subr.mxu0 0.0
  %295 = vmatpush1.msra.mxu0 0.0
  %296 = vmatprep.subr.mxu0 0.0
  %297 = vmatpush1.msra.mxu0 0.0
  %298 = vmatprep.subr.mxu0 0.0
  %299 = vmatpush1.msra.mxu0 0.0
  %300 = vmatprep.subr.mxu0 0.0
  %301 = vmatpush1.msra.mxu0 0.0
  %302 = vmatprep.subr.mxu0 0.0
  %303 = vmatpush1.msra.mxu0 0.0
  %304 = vmatprep.subr.mxu0 0.0
  %305 = vmatpush1.msra.mxu0 0.0
  %306 = vmatprep.subr.mxu0 0.0
  %307 = vmatpush1.msra.mxu0 0.0
  %308 = vmatprep.mubr.f32.mxu0 0.0
  %309 = vmatmul.mubr.f32.gmra.mrb[0].mxu0 %v197
  %v310 = vpop.f32.mrb[0].mxu0
  %v311 = vadd.f32 0.0, %v310
  %v312 = vpop.f32.mrb[0].mxu0
  %313 = vmatprep.mubr.f32.mxu0 0.0
  %314 = vmatmul.mubr.f32.gmra.mrb[0].mxu0 %v200
  %v315 = vpop.f32.mrb[0].mxu0
  %v316 = vadd.f32 0.0, %v315
  %v317 = vpop.f32.mrb[0].mxu0
  %318 = vmatprep.mubr.f32.mxu0 0.0
  %319 = vmatmul.mubr.f32.gmra.mrb[0].mxu0 %v203
  %v320 = vpop.f32.mrb[0].mxu0
  %v321 = vadd.f32 0.0, %v320
  %v322 = vpop.f32.mrb[0].mxu0
  %323 = vmatprep.mubr.f32.mxu0 0.0
  %324 = vmatmul.mubr.f32.gmra.mrb[0].mxu0 %v206
  %v325 = vpop.f32.mrb[0].mxu0
  %v326 = vadd.f32 0.0, %v325
  %v327 = vpop.f32.mrb[0].mxu0
  %328 = vmatprep.mubr.f32.mxu0 0.0
  %329 = vmatmul.mubr.f32.gmra.mrb[0].mxu0 %v209
  %v330 = vpop.f32.mrb[0].mxu0
  %v331 = vadd.f32 0.0, %v330
  %v332 = vpop.f32.mrb[0].mxu0
  %333 = vmatprep.mubr.f32.mxu0 0.0
  %334 = vmatmul.mubr.f32.gmra.mrb[0].mxu0 %v212
  %v335 = vpop.f32.mrb[0].mxu0
  %v336 = vadd.f32 0.0, %v335
  %v337 = vpop.f32.mrb[0].mxu0
  %338 = vmatprep.mubr.f32.mxu0 0.0
  %339 = vmatmul.mubr.f32.gmra.mrb[0].mxu0 %v215
  %v340 = vpop.f32.mrb[0].mxu0
  %v341 = vadd.f32 0.0, %v340
  %v342 = vpop.f32.mrb[0].mxu0
  %343 = vmatprep.mubr.f32.mxu0 0.0
  %344 = vmatmul.mubr.f32.gmra.mrb[0].mxu0 %v218
  %v345 = vpop.f32.mrb[0].mxu0
  %v346 = vadd.f32 0.0, %v345
  %v347 = vpop.f32.mrb[0].mxu0
  %348 = vmatprep.mubr.f32.mxu0 0.0
  %349 = vmatmul.mubr.f32.gmra.mrb[0].mxu0 %v221
  %v350 = vpop.f32.mrb[0].mxu0
  %v351 = vadd.f32 0.0, %v350
  %v352 = vpop.f32.mrb[0].mxu0
  %353 = vmatprep.mubr.f32.mxu0 0.0
  %354 = vmatmul.mubr.f32.gmra.mrb[0].mxu0 %v224
  %v355 = vpop.f32.mrb[0].mxu0
  %v356 = vadd.f32 0.0, %v355
  %v357 = vpop.f32.mrb[0].mxu0
  %358 = vmatprep.mubr.f32.mxu0 0.0
  %359 = vmatmul.mubr.f32.gmra.mrb[0].mxu0 %v227
  %v360 = vpop.f32.mrb[0].mxu0
  %v361 = vadd.f32 0.0, %v360
  %v362 = vpop.f32.mrb[0].mxu0
  %363 = vmatprep.mubr.f32.mxu0 0.0
  %364 = vmatmul.mubr.f32.gmra.mrb[0].mxu0 %v230
  %v365 = vpop.f32.mrb[0].mxu0
  %v366 = vadd.f32 0.0, %v365
  %v367 = vpop.f32.mrb[0].mxu0
  %368 = vmatprep.mubr.f32.mxu0 0.0
  %369 = vmatmul.mubr.f32.gmra.mrb[0].mxu0 %v233
  %v370 = vpop.f32.mrb[0].mxu0
  %v371 = vadd.f32 0.0, %v370
  %v372 = vpop.f32.mrb[0].mxu0
  %373 = vmatprep.mubr.f32.mxu0 0.0
  %374 = vmatmul.mubr.f32.gmra.mrb[0].mxu0 %v236
  %v375 = vpop.f32.mrb[0].mxu0
  %v376 = vadd.f32 0.0, %v375
  %v377 = vpop.f32.mrb[0].mxu0
  %378 = vmatprep.mubr.f32.mxu0 0.0
  %379 = vmatmul.mubr.f32.gmra.mrb[0].mxu0 %v239
  %v380 = vpop.f32.mrb[0].mxu0
  %v381 = vadd.f32 0.0, %v380
  %v382 = vpop.f32.mrb[0].mxu0
  %383 = vmatprep.mubr.f32.mxu0 0.0
  %384 = vmatmul.mubr.f32.gmra.mrb[0].mxu0 %v242
  %v385 = vpop.f32.mrb[0].mxu0
  %v386 = vadd.f32 0.0, %v385
  %v387 = vpop.f32.mrb[0].mxu0
  %388 = vdwg.mxu0
  %v389 = vmul.f32 %v311, 0.0625
  %v390 = vmul.f32 %v316, 0.0625
  %v391 = vmul.f32 %v321, 0.0625
  %v392 = vmul.f32 %v326, 0.0625
  %v393 = vmul.f32 %v331, 0.0625
  %v394 = vmul.f32 %v336, 0.0625
  %v395 = vmul.f32 %v341, 0.0625
  %v396 = vmul.f32 %v346, 0.0625
  %v397 = vmul.f32 %v351, 0.0625
  %v398 = vmul.f32 %v356, 0.0625
  %v399 = vmul.f32 %v361, 0.0625
  %v400 = vmul.f32 %v366, 0.0625
  %v401 = vmul.f32 %v371, 0.0625
  %v402 = vmul.f32 %v376, 0.0625
  %v403 = vmul.f32 %v381, 0.0625
  %v404 = vmul.f32 %v386, 0.0625
  %vm405 = vcmask 31744
  %v407 = vsel %vm405, %v389, 0
  %v410 = vsel %vm405, %v390, 0
  %v413 = vsel %vm405, %v391, 0
  %v416 = vsel %vm405, %v392, 0
  %v419 = vsel %vm405, %v393, 0
  %v422 = vsel %vm405, %v394, 0
  %v425 = vsel %vm405, %v395, 0
  %v428 = vsel %vm405, %v396, 0
  %v431 = vsel %vm405, %v397, 0
  %v434 = vsel %vm405, %v398, 0
  %v437 = vsel %vm405, %v399, 0
  %v440 = vsel %vm405, %v400, 0
  %v443 = vsel %vm405, %v401, 0
  %v446 = vsel %vm405, %v402, 0
  %v449 = vsel %vm405, %v403, 0
  %v452 = vsel %vm405, %v404, 0
  %vm454 = vcmask 1043456
  %v456 = vsel %vm454, %v194, 0
  %458 = vmatprep.subr.mxu0 0.0
  %459 = vmatpush1.msra.mxu0 %v456
  %460 = vmatprep.subr.mxu0 0.0
  %461 = vmatpush1.msra.mxu0 0.0
  %462 = vmatprep.subr.mxu0 0.0
  %463 = vmatpush1.msra.mxu0 0.0
  %464 = vmatprep.subr.mxu0 0.0
  %465 = vmatpush1.msra.mxu0 0.0
  %466 = vmatprep.subr.mxu0 0.0
  %467 = vmatpush1.msra.mxu0 0.0
  %468 = vmatprep.subr.mxu0 0.0
  %469 = vmatpush1.msra.mxu0 0.0
  %470 = vmatprep.subr.mxu0 0.0
  %471 = vmatpush1.msra.mxu0 0.0
  %472 = vmatprep.subr.mxu0 0.0
  %473 = vmatpush1.msra.mxu0 0.0
  %474 = vmatprep.subr.mxu0 0.0
  %475 = vmatpush1.msra.mxu0 0.0
  %476 = vmatprep.subr.mxu0 0.0
  %477 = vmatpush1.msra.mxu0 0.0
  %478 = vmatprep.subr.mxu0 0.0
  %479 = vmatpush1.msra.mxu0 0.0
  %480 = vmatprep.subr.mxu0 0.0
  %481 = vmatpush1.msra.mxu0 0.0
  %482 = vmatprep.subr.mxu0 0.0
  %483 = vmatpush1.msra.mxu0 0.0
  %484 = vmatprep.subr.mxu0 0.0
  %485 = vmatpush1.msra.mxu0 0.0
  %486 = vmatprep.subr.mxu0 0.0
  %487 = vmatpush1.msra.mxu0 0.0
  %488 = vmatprep.subr.mxu0 0.0
  %489 = vmatpush1.msra.mxu0 0.0
  %490 = vmatprep.subr.mxu0 0.0
  %491 = vmatpush1.msra.mxu0 0.0
  %492 = vmatprep.subr.mxu0 0.0
  %493 = vmatpush1.msra.mxu0 0.0
  %494 = vmatprep.subr.mxu0 0.0
  %495 = vmatpush1.msra.mxu0 0.0
  %496 = vmatprep.subr.mxu0 0.0
  %497 = vmatpush1.msra.mxu0 0.0
  %498 = vmatprep.subr.mxu0 0.0
  %499 = vmatpush1.msra.mxu0 0.0
  %500 = vmatprep.subr.mxu0 0.0
  %501 = vmatpush1.msra.mxu0 0.0
  %502 = vmatprep.subr.mxu0 0.0
  %503 = vmatpush1.msra.mxu0 0.0
  %504 = vmatprep.subr.mxu0 0.0
  %505 = vmatpush1.msra.mxu0 0.0
  %506 = vmatprep.subr.mxu0 0.0
  %507 = vmatpush1.msra.mxu0 0.0
  %508 = vmatprep.subr.mxu0 0.0
  %509 = vmatpush1.msra.mxu0 0.0
  %510 = vmatprep.subr.mxu0 0.0
  %511 = vmatpush1.msra.mxu0 0.0
  %512 = vmatprep.subr.mxu0 0.0
  %513 = vmatpush1.msra.mxu0 0.0
  %514 = vmatprep.subr.mxu0 0.0
  %515 = vmatpush1.msra.mxu0 0.0
  %516 = vmatprep.subr.mxu0 0.0
  %517 = vmatpush1.msra.mxu0 0.0
  %518 = vmatprep.subr.mxu0 0.0
  %519 = vmatpush1.msra.mxu0 0.0
  %520 = vmatprep.subr.mxu0 0.0
  %521 = vmatpush1.msra.mxu0 0.0
  %522 = vmatprep.mubr.f32.mxu0 0.0
  %523 = vmatmul.mubr.f32.gmra.mrb[0].mxu0 %v407
  %v524 = vpop.f32.mrb[0].mxu0
  %v525 = vadd.f32 0.0, %v524
  %v526 = vpop.f32.mrb[0].mxu0
  %527 = vmatprep.mubr.f32.mxu0 0.0
  %528 = vmatmul.mubr.f32.gmra.mrb[0].mxu0 %v410
  %v529 = vpop.f32.mrb[0].mxu0
  %v530 = vadd.f32 0.0, %v529
  %v531 = vpop.f32.mrb[0].mxu0
  %532 = vmatprep.mubr.f32.mxu0 0.0
  %533 = vmatmul.mubr.f32.gmra.mrb[0].mxu0 %v413
  %v534 = vpop.f32.mrb[0].mxu0
  %v535 = vadd.f32 0.0, %v534
  %v536 = vpop.f32.mrb[0].mxu0
  %537 = vmatprep.mubr.f32.mxu0 0.0
  %538 = vmatmul.mubr.f32.gmra.mrb[0].mxu0 %v416
  %v539 = vpop.f32.mrb[0].mxu0
  %v540 = vadd.f32 0.0, %v539
  %v541 = vpop.f32.mrb[0].mxu0
  %542 = vmatprep.mubr.f32.mxu0 0.0
  %543 = vmatmul.mubr.f32.gmra.mrb[0].mxu0 %v419
  %v544 = vpop.f32.mrb[0].mxu0
  %v545 = vadd.f32 0.0, %v544
  %v546 = vpop.f32.mrb[0].mxu0
  %547 = vmatprep.mubr.f32.mxu0 0.0
  %548 = vmatmul.mubr.f32.gmra.mrb[0].mxu0 %v422
  %v549 = vpop.f32.mrb[0].mxu0
  %v550 = vadd.f32 0.0, %v549
  %v551 = vpop.f32.mrb[0].mxu0
  %552 = vmatprep.mubr.f32.mxu0 0.0
  %553 = vmatmul.mubr.f32.gmra.mrb[0].mxu0 %v425
  %v554 = vpop.f32.mrb[0].mxu0
  %v555 = vadd.f32 0.0, %v554
  %v556 = vpop.f32.mrb[0].mxu0
  %557 = vmatprep.mubr.f32.mxu0 0.0
  %558 = vmatmul.mubr.f32.gmra.mrb[0].mxu0 %v428
  %v559 = vpop.f32.mrb[0].mxu0
  %v560 = vadd.f32 0.0, %v559
  %v561 = vpop.f32.mrb[0].mxu0
  %562 = vmatprep.mubr.f32.mxu0 0.0
  %563 = vmatmul.mubr.f32.gmra.mrb[0].mxu0 %v431
  %v564 = vpop.f32.mrb[0].mxu0
  %v565 = vadd.f32 0.0, %v564
  %v566 = vpop.f32.mrb[0].mxu0
  %567 = vmatprep.mubr.f32.mxu0 0.0
  %568 = vmatmul.mubr.f32.gmra.mrb[0].mxu0 %v434
  %v569 = vpop.f32.mrb[0].mxu0
  %v570 = vadd.f32 0.0, %v569
  %v571 = vpop.f32.mrb[0].mxu0
  %572 = vmatprep.mubr.f32.mxu0 0.0
  %573 = vmatmul.mubr.f32.gmra.mrb[0].mxu0 %v437
  %v574 = vpop.f32.mrb[0].mxu0
  %v575 = vadd.f32 0.0, %v574
  %v576 = vpop.f32.mrb[0].mxu0
  %577 = vmatprep.mubr.f32.mxu0 0.0
  %578 = vmatmul.mubr.f32.gmra.mrb[0].mxu0 %v440
  %v579 = vpop.f32.mrb[0].mxu0
  %v580 = vadd.f32 0.0, %v579
  %v581 = vpop.f32.mrb[0].mxu0
  %582 = vmatprep.mubr.f32.mxu0 0.0
  %583 = vmatmul.mubr.f32.gmra.mrb[0].mxu0 %v443
  %v584 = vpop.f32.mrb[0].mxu0
  %v585 = vadd.f32 0.0, %v584
  %v586 = vpop.f32.mrb[0].mxu0
  %587 = vmatprep.mubr.f32.mxu0 0.0
  %588 = vmatmul.mubr.f32.gmra.mrb[0].mxu0 %v446
  %v589 = vpop.f32.mrb[0].mxu0
  %v590 = vadd.f32 0.0, %v589
  %v591 = vpop.f32.mrb[0].mxu0
  %592 = vmatprep.mubr.f32.mxu0 0.0
  %593 = vmatmul.mubr.f32.gmra.mrb[0].mxu0 %v449
  %v594 = vpop.f32.mrb[0].mxu0
  %v595 = vadd.f32 0.0, %v594
  %v596 = vpop.f32.mrb[0].mxu0
  %597 = vmatprep.mubr.f32.mxu0 0.0
  %598 = vmatmul.mubr.f32.gmra.mrb[0].mxu0 %v452
  %v599 = vpop.f32.mrb[0].mxu0
  %v600 = vadd.f32 0.0, %v599
  %v601 = vpop.f32.mrb[0].mxu0
  %602 = vdwg.mxu0
  %v603 = vsub.f32 %v124, %v525
  %v604 = vsub.f32 %v127, %v530
  %v605 = vsub.f32 %v132, %v535
  %v606 = vsub.f32 %v135, %v540
  %v607 = vsub.f32 %v140, %v545
  %v608 = vsub.f32 %v143, %v550
  %v609 = vsub.f32 %v148, %v555
  %v610 = vsub.f32 %v151, %v560
  %v611 = vsub.f32 %v156, %v565
  %v612 = vsub.f32 %v159, %v570
  %v613 = vsub.f32 %v164, %v575
  %v614 = vsub.f32 %v167, %v580
  %v615 = vsub.f32 %v172, %v585
  %v616 = vsub.f32 %v175, %v590
  %v617 = vsub.f32 %v180, %v595
  %v618 = vsub.f32 %v183, %v600
  %v619 = vmul.f32 %v603, %v603
  %v620 = vmul.f32 %v604, %v604
  %v621 = vmul.f32 %v605, %v605
  %v622 = vmul.f32 %v606, %v606
  %v623 = vmul.f32 %v607, %v607
  %v624 = vmul.f32 %v608, %v608
  %v625 = vmul.f32 %v609, %v609
  %v626 = vmul.f32 %v610, %v610
  %v627 = vmul.f32 %v611, %v611
  %v628 = vmul.f32 %v612, %v612
  %v629 = vmul.f32 %v613, %v613
  %v630 = vmul.f32 %v614, %v614
  %v631 = vmul.f32 %v615, %v615
  %v632 = vmul.f32 %v616, %v616
  %v633 = vmul.f32 %v617, %v617
  %v634 = vmul.f32 %v618, %v618
  %v636 = vsel %vm195, %v619, 0
  %v639 = vsel %vm195, %v620, 0
  %v642 = vsel %vm195, %v621, 0
  %v645 = vsel %vm195, %v622, 0
  %v648 = vsel %vm195, %v623, 0
  %v651 = vsel %vm195, %v624, 0
  %v654 = vsel %vm195, %v625, 0
  %v657 = vsel %vm195, %v626, 0
  %v660 = vsel %vm195, %v627, 0
  %v663 = vsel %vm195, %v628, 0
  %v666 = vsel %vm195, %v629, 0
  %v669 = vsel %vm195, %v630, 0
  %v672 = vsel %vm195, %v631, 0
  %v675 = vsel %vm195, %v632, 0
  %v678 = vsel %vm195, %v633, 0
  %v681 = vsel %vm195, %v634, 0
  %683 = vmatprep.subr.mxu0 0.0
  %684 = vmatpush1.msra.mxu0 %v186
  %685 = vmatprep.subr.mxu0 0.0
  %686 = vmatpush1.msra.mxu0 %v187
  %687 = vmatprep.subr.mxu0 0.0
  %688 = vmatpush1.msra.mxu0 %v188
  %689 = vmatprep.subr.mxu0 0.0
  %690 = vmatpush1.msra.mxu0 %v189
  %691 = vmatprep.subr.mxu0 0.0
  %692 = vmatpush1.msra.mxu0 %v190
  %693 = vmatprep.subr.mxu0 0.0
  %694 = vmatpush1.msra.mxu0 %v191
  %695 = vmatprep.subr.mxu0 0.0
  %696 = vmatpush1.msra.mxu0 %v192
  %697 = vmatprep.subr.mxu0 0.0
  %698 = vmatpush1.msra.mxu0 %v193
  %699 = vmatprep.subr.mxu0 0.0
  %700 = vmatpush1.msra.mxu0 0.0
  %701 = vmatprep.subr.mxu0 0.0
  %702 = vmatpush1.msra.mxu0 0.0
  %703 = vmatprep.subr.mxu0 0.0
  %704 = vmatpush1.msra.mxu0 0.0
  %705 = vmatprep.subr.mxu0 0.0
  %706 = vmatpush1.msra.mxu0 0.0
  %707 = vmatprep.subr.mxu0 0.0
  %708 = vmatpush1.msra.mxu0 0.0
  %709 = vmatprep.subr.mxu0 0.0
  %710 = vmatpush1.msra.mxu0 0.0
  %711 = vmatprep.subr.mxu0 0.0
  %712 = vmatpush1.msra.mxu0 0.0
  %713 = vmatprep.subr.mxu0 0.0
  %714 = vmatpush1.msra.mxu0 0.0
  %715 = vmatprep.subr.mxu0 0.0
  %716 = vmatpush1.msra.mxu0 0.0
  %717 = vmatprep.subr.mxu0 0.0
  %718 = vmatpush1.msra.mxu0 0.0
  %719 = vmatprep.subr.mxu0 0.0
  %720 = vmatpush1.msra.mxu0 0.0
  %721 = vmatprep.subr.mxu0 0.0
  %722 = vmatpush1.msra.mxu0 0.0
  %723 = vmatprep.subr.mxu0 0.0
  %724 = vmatpush1.msra.mxu0 0.0
  %725 = vmatprep.subr.mxu0 0.0
  %726 = vmatpush1.msra.mxu0 0.0
  %727 = vmatprep.subr.mxu0 0.0
  %728 = vmatpush1.msra.mxu0 0.0
  %729 = vmatprep.subr.mxu0 0.0
  %730 = vmatpush1.msra.mxu0 0.0
  %731 = vmatprep.subr.mxu0 0.0
  %732 = vmatpush1.msra.mxu0 0.0
  %733 = vmatprep.subr.mxu0 0.0
  %734 = vmatpush1.msra.mxu0 0.0
  %735 = vmatprep.subr.mxu0 0.0
  %736 = vmatpush1.msra.mxu0 0.0
  %737 = vmatprep.subr.mxu0 0.0
  %738 = vmatpush1.msra.mxu0 0.0
  %739 = vmatprep.subr.mxu0 0.0
  %740 = vmatpush1.msra.mxu0 0.0
  %741 = vmatprep.subr.mxu0 0.0
  %742 = vmatpush1.msra.mxu0 0.0
  %743 = vmatprep.subr.mxu0 0.0
  %744 = vmatpush1.msra.mxu0 0.0
  %745 = vmatprep.subr.mxu0 0.0
  %746 = vmatpush1.msra.mxu0 0.0
  %747 = vmatprep.mubr.f32.mxu0 0.0
  %748 = vmatmul.mubr.f32.gmra.mrb[0].mxu0 %v636
  %v749 = vpop.f32.mrb[0].mxu0
  %v750 = vadd.f32 0.0, %v749
  %v751 = vpop.f32.mrb[0].mxu0
  %752 = vmatprep.mubr.f32.mxu0 0.0
  %753 = vmatmul.mubr.f32.gmra.mrb[0].mxu0 %v639
  %v754 = vpop.f32.mrb[0].mxu0
  %v755 = vadd.f32 0.0, %v754
  %v756 = vpop.f32.mrb[0].mxu0
  %757 = vmatprep.mubr.f32.mxu0 0.0
  %758 = vmatmul.mubr.f32.gmra.mrb[0].mxu0 %v642
  %v759 = vpop.f32.mrb[0].mxu0
  %v760 = vadd.f32 0.0, %v759
  %v761 = vpop.f32.mrb[0].mxu0
  %762 = vmatprep.mubr.f32.mxu0 0.0
  %763 = vmatmul.mubr.f32.gmra.mrb[0].mxu0 %v645
  %v764 = vpop.f32.mrb[0].mxu0
  %v765 = vadd.f32 0.0, %v764
  %v766 = vpop.f32.mrb[0].mxu0
  %767 = vmatprep.mubr.f32.mxu0 0.0
  %768 = vmatmul.mubr.f32.gmra.mrb[0].mxu0 %v648
  %v769 = vpop.f32.mrb[0].mxu0
  %v770 = vadd.f32 0.0, %v769
  %v771 = vpop.f32.mrb[0].mxu0
  %772 = vmatprep.mubr.f32.mxu0 0.0
  %773 = vmatmul.mubr.f32.gmra.mrb[0].mxu0 %v651
  %v774 = vpop.f32.mrb[0].mxu0
  %v775 = vadd.f32 0.0, %v774
  %v776 = vpop.f32.mrb[0].mxu0
  %777 = vmatprep.mubr.f32.mxu0 0.0
  %778 = vmatmul.mubr.f32.gmra.mrb[0].mxu0 %v654
  %v779 = vpop.f32.mrb[0].mxu0
  %v780 = vadd.f32 0.0, %v779
  %v781 = vpop.f32.mrb[0].mxu0
  %782 = vmatprep.mubr.f32.mxu0 0.0
  %783 = vmatmul.mubr.f32.gmra.mrb[0].mxu0 %v657
  %v784 = vpop.f32.mrb[0].mxu0
  %v785 = vadd.f32 0.0, %v784
  %v786 = vpop.f32.mrb[0].mxu0
  %787 = vmatprep.mubr.f32.mxu0 0.0
  %788 = vmatmul.mubr.f32.gmra.mrb[0].mxu0 %v660
  %v789 = vpop.f32.mrb[0].mxu0
  %v790 = vadd.f32 0.0, %v789
  %v791 = vpop.f32.mrb[0].mxu0
  %792 = vmatprep.mubr.f32.mxu0 0.0
  %793 = vmatmul.mubr.f32.gmra.mrb[0].mxu0 %v663
  %v794 = vpop.f32.mrb[0].mxu0
  %v795 = vadd.f32 0.0, %v794
  %v796 = vpop.f32.mrb[0].mxu0
  %797 = vmatprep.mubr.f32.mxu0 0.0
  %798 = vmatmul.mubr.f32.gmra.mrb[0].mxu0 %v666
  %v799 = vpop.f32.mrb[0].mxu0
  %v800 = vadd.f32 0.0, %v799
  %v801 = vpop.f32.mrb[0].mxu0
  %802 = vmatprep.mubr.f32.mxu0 0.0
  %803 = vmatmul.mubr.f32.gmra.mrb[0].mxu0 %v669
  %v804 = vpop.f32.mrb[0].mxu0
  %v805 = vadd.f32 0.0, %v804
  %v806 = vpop.f32.mrb[0].mxu0
  %807 = vmatprep.mubr.f32.mxu0 0.0
  %808 = vmatmul.mubr.f32.gmra.mrb[0].mxu0 %v672
  %v809 = vpop.f32.mrb[0].mxu0
  %v810 = vadd.f32 0.0, %v809
  %v811 = vpop.f32.mrb[0].mxu0
  %812 = vmatprep.mubr.f32.mxu0 0.0
  %813 = vmatmul.mubr.f32.gmra.mrb[0].mxu0 %v675
  %v814 = vpop.f32.mrb[0].mxu0
  %v815 = vadd.f32 0.0, %v814
  %v816 = vpop.f32.mrb[0].mxu0
  %817 = vmatprep.mubr.f32.mxu0 0.0
  %818 = vmatmul.mubr.f32.gmra.mrb[0].mxu0 %v678
  %v819 = vpop.f32.mrb[0].mxu0
  %v820 = vadd.f32 0.0, %v819
  %v821 = vpop.f32.mrb[0].mxu0
  %822 = vmatprep.mubr.f32.mxu0 0.0
  %823 = vmatmul.mubr.f32.gmra.mrb[0].mxu0 %v681
  %v824 = vpop.f32.mrb[0].mxu0
  %v825 = vadd.f32 0.0, %v824
  %v826 = vpop.f32.mrb[0].mxu0
  %827 = vdwg.mxu0
  %v828 = vmul.f32 %v750, 0.0625
  %v829 = vmul.f32 %v755, 0.0625
  %v830 = vmul.f32 %v760, 0.0625
  %v831 = vmul.f32 %v765, 0.0625
  %v832 = vmul.f32 %v770, 0.0625
  %v833 = vmul.f32 %v775, 0.0625
  %v834 = vmul.f32 %v780, 0.0625
  %v835 = vmul.f32 %v785, 0.0625
  %v836 = vmul.f32 %v790, 0.0625
  %v837 = vmul.f32 %v795, 0.0625
  %v838 = vmul.f32 %v800, 0.0625
  %v839 = vmul.f32 %v805, 0.0625
  %v840 = vmul.f32 %v810, 0.0625
  %v841 = vmul.f32 %v815, 0.0625
  %v842 = vmul.f32 %v820, 0.0625
  %v843 = vmul.f32 %v825, 0.0625
  %v845 = vsel %vm405, %v828, 0
  %v848 = vsel %vm405, %v829, 0
  %v851 = vsel %vm405, %v830, 0
  %v854 = vsel %vm405, %v831, 0
  %v857 = vsel %vm405, %v832, 0
  %v860 = vsel %vm405, %v833, 0
  %v863 = vsel %vm405, %v834, 0
  %v866 = vsel %vm405, %v835, 0
  %v869 = vsel %vm405, %v836, 0
  %v872 = vsel %vm405, %v837, 0
  %v875 = vsel %vm405, %v838, 0
  %v878 = vsel %vm405, %v839, 0
  %v881 = vsel %vm405, %v840, 0
  %v884 = vsel %vm405, %v841, 0
  %v887 = vsel %vm405, %v842, 0
  %v890 = vsel %vm405, %v843, 0
  %892 = vmatprep.subr.mxu0 0.0
  %893 = vmatpush1.msra.mxu0 %v456
  %894 = vmatprep.subr.mxu0 0.0
  %895 = vmatpush1.msra.mxu0 0.0
  %896 = vmatprep.subr.mxu0 0.0
  %897 = vmatpush1.msra.mxu0 0.0
  %898 = vmatprep.subr.mxu0 0.0
  %899 = vmatpush1.msra.mxu0 0.0
  %900 = vmatprep.subr.mxu0 0.0
  %901 = vmatpush1.msra.mxu0 0.0
  %902 = vmatprep.subr.mxu0 0.0
  %903 = vmatpush1.msra.mxu0 0.0
  %904 = vmatprep.subr.mxu0 0.0
  %905 = vmatpush1.msra.mxu0 0.0
  %906 = vmatprep.subr.mxu0 0.0
  %907 = vmatpush1.msra.mxu0 0.0
  %908 = vmatprep.subr.mxu0 0.0
  %909 = vmatpush1.msra.mxu0 0.0
  %910 = vmatprep.subr.mxu0 0.0
  %911 = vmatpush1.msra.mxu0 0.0
  %912 = vmatprep.subr.mxu0 0.0
  %913 = vmatpush1.msra.mxu0 0.0
  %914 = vmatprep.subr.mxu0 0.0
  %915 = vmatpush1.msra.mxu0 0.0
  %916 = vmatprep.subr.mxu0 0.0
  %917 = vmatpush1.msra.mxu0 0.0
  %918 = vmatprep.subr.mxu0 0.0
  %919 = vmatpush1.msra.mxu0 0.0
  %920 = vmatprep.subr.mxu0 0.0
  %921 = vmatpush1.msra.mxu0 0.0
  %922 = vmatprep.subr.mxu0 0.0
  %923 = vmatpush1.msra.mxu0 0.0
  %924 = vmatprep.subr.mxu0 0.0
  %925 = vmatpush1.msra.mxu0 0.0
  %926 = vmatprep.subr.mxu0 0.0
  %927 = vmatpush1.msra.mxu0 0.0
  %928 = vmatprep.subr.mxu0 0.0
  %929 = vmatpush1.msra.mxu0 0.0
  %930 = vmatprep.subr.mxu0 0.0
  %931 = vmatpush1.msra.mxu0 0.0
  %932 = vmatprep.subr.mxu0 0.0
  %933 = vmatpush1.msra.mxu0 0.0
  %934 = vmatprep.subr.mxu0 0.0
  %935 = vmatpush1.msra.mxu0 0.0
  %936 = vmatprep.subr.mxu0 0.0
  %937 = vmatpush1.msra.mxu0 0.0
  %938 = vmatprep.subr.mxu0 0.0
  %939 = vmatpush1.msra.mxu0 0.0
  %940 = vmatprep.subr.mxu0 0.0
  %941 = vmatpush1.msra.mxu0 0.0
  %942 = vmatprep.subr.mxu0 0.0
  %943 = vmatpush1.msra.mxu0 0.0
  %944 = vmatprep.subr.mxu0 0.0
  %945 = vmatpush1.msra.mxu0 0.0
  %946 = vmatprep.subr.mxu0 0.0
  %947 = vmatpush1.msra.mxu0 0.0
  %948 = vmatprep.subr.mxu0 0.0
  %949 = vmatpush1.msra.mxu0 0.0
  %950 = vmatprep.subr.mxu0 0.0
  %951 = vmatpush1.msra.mxu0 0.0
  %952 = vmatprep.subr.mxu0 0.0
  %953 = vmatpush1.msra.mxu0 0.0
  %954 = vmatprep.subr.mxu0 0.0
  %955 = vmatpush1.msra.mxu0 0.0
  %956 = vmatprep.mubr.f32.mxu0 0.0
  %957 = vmatmul.mubr.f32.gmra.mrb[0].mxu0 %v845
  %v958 = vpop.f32.mrb[0].mxu0
  %v959 = vadd.f32 1e-05, %v958
  %v960 = vpop.f32.mrb[0].mxu0
  %961 = vmatprep.mubr.f32.mxu0 0.0
  %962 = vmatmul.mubr.f32.gmra.mrb[0].mxu0 %v848
  %v963 = vpop.f32.mrb[0].mxu0
  %v964 = vadd.f32 1e-05, %v963
  %v965 = vpop.f32.mrb[0].mxu0
  %966 = vmatprep.mubr.f32.mxu0 0.0
  %967 = vmatmul.mubr.f32.gmra.mrb[0].mxu0 %v851
  %v968 = vpop.f32.mrb[0].mxu0
  %v969 = vadd.f32 1e-05, %v968
  %v970 = vpop.f32.mrb[0].mxu0
  %971 = vmatprep.mubr.f32.mxu0 0.0
  %972 = vmatmul.mubr.f32.gmra.mrb[0].mxu0 %v854
  %v973 = vpop.f32.mrb[0].mxu0
  %v974 = vadd.f32 1e-05, %v973
  %v975 = vpop.f32.mrb[0].mxu0
  %976 = vmatprep.mubr.f32.mxu0 0.0
  %977 = vmatmul.mubr.f32.gmra.mrb[0].mxu0 %v857
  %v978 = vpop.f32.mrb[0].mxu0
  %v979 = vadd.f32 1e-05, %v978
  %v980 = vpop.f32.mrb[0].mxu0
  %981 = vmatprep.mubr.f32.mxu0 0.0
  %982 = vmatmul.mubr.f32.gmra.mrb[0].mxu0 %v860
  %v983 = vpop.f32.mrb[0].mxu0
  %v984 = vadd.f32 1e-05, %v983
  %v985 = vpop.f32.mrb[0].mxu0
  %986 = vmatprep.mubr.f32.mxu0 0.0
  %987 = vmatmul.mubr.f32.gmra.mrb[0].mxu0 %v863
  %v988 = vpop.f32.mrb[0].mxu0
  %v989 = vadd.f32 1e-05, %v988
  %v990 = vpop.f32.mrb[0].mxu0
  %991 = vmatprep.mubr.f32.mxu0 0.0
  %992 = vmatmul.mubr.f32.gmra.mrb[0].mxu0 %v866
  %v993 = vpop.f32.mrb[0].mxu0
  %v994 = vadd.f32 1e-05, %v993
  %v995 = vpop.f32.mrb[0].mxu0
  %996 = vmatprep.mubr.f32.mxu0 0.0
  %997 = vmatmul.mubr.f32.gmra.mrb[0].mxu0 %v869
  %v998 = vpop.f32.mrb[0].mxu0
  %v999 = vadd.f32 1e-05, %v998
  %v1000 = vpop.f32.mrb[0].mxu0
  %1001 = vmatprep.mubr.f32.mxu0 0.0
  %1002 = vmatmul.mubr.f32.gmra.mrb[0].mxu0 %v872
  %v1003 = vpop.f32.mrb[0].mxu0
  %v1004 = vadd.f32 1e-05, %v1003
  %v1005 = vpop.f32.mrb[0].mxu0
  %1006 = vmatprep.mubr.f32.mxu0 0.0
  %1007 = vmatmul.mubr.f32.gmra.mrb[0].mxu0 %v875
  %v1008 = vpop.f32.mrb[0].mxu0
  %v1009 = vadd.f32 1e-05, %v1008
  %v1010 = vpop.f32.mrb[0].mxu0
  %1011 = vmatprep.mubr.f32.mxu0 0.0
  %1012 = vmatmul.mubr.f32.gmra.mrb[0].mxu0 %v878
  %v1013 = vpop.f32.mrb[0].mxu0
  %v1014 = vadd.f32 1e-05, %v1013
  %v1015 = vpop.f32.mrb[0].mxu0
  %1016 = vmatprep.mubr.f32.mxu0 0.0
  %1017 = vmatmul.mubr.f32.gmra.mrb[0].mxu0 %v881
  %v1018 = vpop.f32.mrb[0].mxu0
  %v1019 = vadd.f32 1e-05, %v1018
  %v1020 = vpop.f32.mrb[0].mxu0
  %1021 = vmatprep.mubr.f32.mxu0 0.0
  %1022 = vmatmul.mubr.f32.gmra.mrb[0].mxu0 %v884
  %v1023 = vpop.f32.mrb[0].mxu0
  %v1024 = vadd.f32 1e-05, %v1023
  %v1025 = vpop.f32.mrb[0].mxu0
  %1026 = vmatprep.mubr.f32.mxu0 0.0
  %1027 = vmatmul.mubr.f32.gmra.mrb[0].mxu0 %v887
  %v1028 = vpop.f32.mrb[0].mxu0
  %v1029 = vadd.f32 1e-05, %v1028
  %v1030 = vpop.f32.mrb[0].mxu0
  %1031 = vmatprep.mubr.f32.mxu0 0.0
  %1032 = vmatmul.mubr.f32.gmra.mrb[0].mxu0 %v890
  %v1033 = vpop.f32.mrb[0].mxu0
  %v1034 = vadd.f32 1e-05, %v1033
  %v1035 = vpop.f32.mrb[0].mxu0
  %1036 = vdwg.mxu0
  %v1037 = vrsqrt.pop %v959
  %v1038 = vrsqrt.pop %v964
  %v1039 = vrsqrt.pop %v969
  %v1040 = vrsqrt.pop %v974
  %v1041 = vrsqrt.pop %v979
  %v1042 = vrsqrt.pop %v984
  %v1043 = vrsqrt.pop %v989
  %v1044 = vrsqrt.pop %v994
  %v1045 = vrsqrt.pop %v999
  %v1046 = vrsqrt.pop %v1004
  %v1047 = vrsqrt.pop %v1009
  %v1048 = vrsqrt.pop %v1014
  %v1049 = vrsqrt.pop %v1019
  %v1050 = vrsqrt.pop %v1024
  %v1051 = vrsqrt.pop %v1029
  %v1052 = vrsqrt.pop %v1034
  %v1053 = vmul.f32 %v603, %v1037
  %v1054 = vmul.f32 %v604, %v1038
  %v1055 = vmul.f32 %v605, %v1039
  %v1056 = vmul.f32 %v606, %v1040
  %v1057 = vmul.f32 %v607, %v1041
  %v1058 = vmul.f32 %v608, %v1042
  %v1059 = vmul.f32 %v609, %v1043
  %v1060 = vmul.f32 %v610, %v1044
  %v1061 = vmul.f32 %v611, %v1045
  %v1062 = vmul.f32 %v612, %v1046
  %v1063 = vmul.f32 %v613, %v1047
  %v1064 = vmul.f32 %v614, %v1048
  %v1065 = vmul.f32 %v615, %v1049
  %v1066 = vmul.f32 %v616, %v1050
  %v1067 = vmul.f32 %v617, %v1051
  %v1068 = vmul.f32 %v618, %v1052
  %v1069 = vld [vmem:[%s4] sm:$0x1]
  %v1071 = vlaneseq
  %v1072 = vshrl.u32 %v1071, 7
  %v1073 = vsub.s32 0, %v1072
  %v1074 = vrot.slane %v1069, %v1073
  %v1076 = vmul.f32 %v1053, %v1074
  %v1077 = vmul.f32 %v1054, %v1074
  %v1078 = vmul.f32 %v1055, %v1074
  %v1079 = vmul.f32 %v1056, %v1074
  %v1080 = vmul.f32 %v1057, %v1074
  %v1081 = vmul.f32 %v1058, %v1074
  %v1082 = vmul.f32 %v1059, %v1074
  %v1083 = vmul.f32 %v1060, %v1074
  %v1084 = vmul.f32 %v1061, %v1074
  %v1085 = vmul.f32 %v1062, %v1074
  %v1086 = vmul.f32 %v1063, %v1074
  %v1087 = vmul.f32 %v1064, %v1074
  %v1088 = vmul.f32 %v1065, %v1074
  %v1089 = vmul.f32 %v1066, %v1074
  %v1090 = vmul.f32 %v1067, %v1074
  %v1091 = vmul.f32 %v1068, %v1074
  %v1092 = vld [vmem:[%s5] sm:$0x1]
  %v1094 = vlaneseq
  %v1095 = vshrl.u32 %v1094, 7
  %v1096 = vsub.s32 0, %v1095
  %v1097 = vrot.slane %v1092, %v1096
  %v1099 = vadd.f32 %v1076, %v1097
  %v1100 = vadd.f32 %v1077, %v1097
  %v1101 = vadd.f32 %v1078, %v1097
  %v1102 = vadd.f32 %v1079, %v1097
  %v1103 = vadd.f32 %v1080, %v1097
  %v1104 = vadd.f32 %v1081, %v1097
  %v1105 = vadd.f32 %v1082, %v1097
  %v1106 = vadd.f32 %v1083, %v1097
  %v1107 = vadd.f32 %v1084, %v1097
  %v1108 = vadd.f32 %v1085, %v1097
  %v1109 = vadd.f32 %v1086, %v1097
  %v1110 = vadd.f32 %v1087, %v1097
  %v1111 = vadd.f32 %v1088, %v1097
  %v1112 = vadd.f32 %v1089, %v1097
  %v1113 = vadd.f32 %v1090, %v1097
  %v1114 = vadd.f32 %v1091, %v1097
  %1115 = vst.msk [vmem:[%s6] sm:$0xff] %vm195, %v1099
  %1116 = vst.msk [vmem:[%s6 + $0x8] sm:$0xff] %vm195, %v1100
  %1117 = vst.msk [vmem:[%s6 + $0x10] sm:$0xff] %vm195, %v1101
  %1118 = vst.msk [vmem:[%s6 + $0x18] sm:$0xff] %vm195, %v1102
  %1119 = vst.msk [vmem:[%s6 + $0x20] sm:$0xff] %vm195, %v1103
  %1120 = vst.msk [vmem:[%s6 + $0x28] sm:$0xff] %vm195, %v1104
  %1121 = vst.msk [vmem:[%s6 + $0x30] sm:$0xff] %vm195, %v1105
  %1122 = vst.msk [vmem:[%s6 + $0x38] sm:$0xff] %vm195, %v1106
  %1123 = vst.msk [vmem:[%s6 + $0x40] sm:$0xff] %vm195, %v1107
  %1124 = vst.msk [vmem:[%s6 + $0x48] sm:$0xff] %vm195, %v1108
  %1125 = vst.msk [vmem:[%s6 + $0x50] sm:$0xff] %vm195, %v1109
  %1126 = vst.msk [vmem:[%s6 + $0x58] sm:$0xff] %vm195, %v1110
  %1127 = vst.msk [vmem:[%s6 + $0x60] sm:$0xff] %vm195, %v1111
  %1128 = vst.msk [vmem:[%s6 + $0x68] sm:$0xff] %vm195, %v1112
  %1129 = vst.msk [vmem:[%s6 + $0x70] sm:$0xff] %vm195, %v1113
  %1130 = vst.msk [vmem:[%s6 + $0x78] sm:$0xff] %vm195, %v1114
  // Predicated region
  $region26: #{tpu_custom_call.1} parent=0 // pred_check
    _
  $region27: #{tpu_custom_call.1} parent=0 // pred_check_branch
    %1132 = sbr.rel (0) target = $region29
  $region28: #{tpu_custom_call.1} parent=0 // pred_region
    _
  $region29: #{tpu_custom_call.1} parent=0 // pred_fallthru
    _
  // Predicated region
  $region30: #{tpu_custom_call.1} parent=0 // pred_check
    _
  $region31: #{tpu_custom_call.1} parent=0 // pred_check_branch
    %1134 = sbr.rel (0) target = $region33
  $region32: #{tpu_custom_call.1} parent=0 // pred_region
    _
  $region33: #{tpu_custom_call.1} parent=0 // pred_fallthru
    _

</llo_original>
